<compile_context>
chip_gen: v7x
topology: tpu7x:2x2x1
jax: 0.10.0
libtpu: 0.0.40
codegen_flags: <defaults>
</compile_context>

<pallas_src>
import jax
import jax.numpy as jnp
from jax import lax
from jax.experimental import pallas as pl
from jax.experimental.pallas import tpu as pltpu


# ----------------------------- Pallas kernel -------------------------------

def _patch_proj_kernel(x_ref, w_ref, b_ref, o_ref):
    # x_ref: (tm, K) bf16 | w_ref: (K, E) bf16 | b_ref: (1, E) f32
    # o_ref: (tm, E) out_dtype (default bf16).  f32 accumulation on the MXU.
    acc = jnp.dot(x_ref[...], w_ref[...], preferred_element_type=jnp.float32)
    o_ref[...] = (acc + b_ref[...]).astype(o_ref.dtype)


def _round_up(x, m):
    return (x + m - 1) // m * m


def _choose_tm(M, tm_max):
    """Pick the M-tile.

    - multiple of 256 for M > 256 (dense MXU rows on v6e/v7x; also a multiple
      of 128 for v5e), and sized so the grid has >= 2 steps where possible so
      both v7x TensorCores get work;
    - for small M, a single sublane-aligned block (no explicit padding — the
      partial tail block, if any, is masked by Pallas).
    """
    tm_max = max(256, (tm_max // 256) * 256)
    if M <= 8:
        return M                          # single block == full dim
    if M <= 256:
        return max(8, (M // 8) * 8)       # 1-2 blocks, partial tail handled by Pallas
    half = -(-M // 2)                     # ceil(M/2)
    return min(tm_max, _round_up(half, 256))


def patch_proj(x_patches, w, b, *, tm=1024, out_dtype=jnp.bfloat16):
    """(M, K) @ (K, E) + b via pallas_call, tiled over M with a cdiv grid."""
    M, K = x_patches.shape
    Kw, E = w.shape
    assert K == Kw, (K, Kw)

    tm_eff = _choose_tm(M, tm)
    grid = (pl.cdiv(M, tm_eff),)

    flops = 2 * M * K * E
    bytes_accessed = (
        x_patches.dtype.itemsize * M * K        # streamed patch rows (bf16)
        + w.dtype.itemsize * K * E              # resident weight
        + b.dtype.itemsize * E                  # resident bias
        + jnp.dtype(out_dtype).itemsize * M * E  # output write
    )

    return pl.pallas_call(
        _patch_proj_kernel,
        out_shape=jax.ShapeDtypeStruct((M, E), out_dtype),
        grid_spec=pltpu.PrefetchScalarGridSpec(
            num_scalar_prefetch=0,
            grid=grid,
            in_specs=[
                pl.BlockSpec((tm_eff, K), lambda i: (i, 0)),   # patch rows (streamed)
                pl.BlockSpec((K, E), lambda i: (0, 0)),        # weight (resident)
                pl.BlockSpec((1, E), lambda i: (0, 0)),        # bias   (resident)
            ],
            out_specs=pl.BlockSpec((tm_eff, E), lambda i: (i, 0)),
        ),
        compiler_params=pltpu.CompilerParams(
            dimension_semantics=("parallel",),
            # Let XLA fuse the patch-extraction reshape/transpose producer
            # into the kernel's first operand (removes an HBM round-trip).
            allow_input_fusion=[True, False, False],
        ),
        cost_estimate=pl.CostEstimate(
            flops=flops, transcendentals=0, bytes_accessed=bytes_accessed),
    )(x_patches, w, b)


# ----------------------------- Module wrapper -------------------------------

class PatchEmbedPallas:
    """Image->Patch embedding matching the PyTorch PatchEmbed forward."""

    def __init__(self, img_size=16, patch_size=8, in_chans=4, embed_dim=128,
                 frames=8, t_patch_size=4, tm=1024, out_dtype=jnp.bfloat16,
                 key=None):
        img_size = (img_size, img_size) if isinstance(img_size, int) else img_size
        patch_size = (patch_size, patch_size) if isinstance(patch_size, int) else patch_size
        assert img_size[1] % patch_size[1] == 0
        assert img_size[0] % patch_size[0] == 0
        assert frames % t_patch_size == 0
        self.img_size = img_size
        self.patch_size = patch_size
        self.frames = frames
        self.t_patch_size = t_patch_size
        self.in_chans = in_chans
        self.embed_dim = embed_dim
        self.tm = tm
        self.out_dtype = out_dtype
        self.t_grid_size = frames // t_patch_size
        self.grid_h = img_size[0] // patch_size[0]
        self.grid_w = img_size[1] // patch_size[1]
        self.num_patches = self.grid_h * self.grid_w * self.t_grid_size

        # Deterministic param init (Conv3d weight (E, C, tp, ph, pw), bias (E,)).
        key = jax.random.PRNGKey(0) if key is None else key
        kw, kb = jax.random.split(key)
        tp, (ph, pw) = t_patch_size, patch_size
        fan_in = in_chans * tp * ph * pw
        bound = 1.0 / jnp.sqrt(fan_in)
        self.conv_w = jax.random.uniform(
            kw, (embed_dim, in_chans, tp, ph, pw), jnp.float32, -bound, bound)
        self.conv_b = jax.random.uniform(
            kb, (embed_dim,), jnp.float32, -bound, bound)

        # Pre-flatten weight for the matmul kernel: (K, E), K ordered (C, tp, ph, pw)
        # (matches PyTorch Conv3d weight layout).  bf16 for the MXU; bias stays f32.
        self.w_mat = self.conv_w.reshape(embed_dim, fan_in).T.astype(jnp.bfloat16)
        self.b_mat = self.conv_b.reshape(1, embed_dim)

    def __call__(self, x):
        # x: (B, C, T, H, W) float32
        B, C, T, H, W = x.shape
        assert H == self.img_size[0] and W == self.img_size[1]
        assert T == self.frames and C == self.in_chans
        tp, (ph, pw) = self.t_patch_size, self.patch_size
        Tg, Hg, Wg = self.t_grid_size, self.grid_h, self.grid_w

        # bf16 *before* the transpose (halves any materialized glue intermediate;
        # accumulation stays f32 inside the kernel).
        xb = x.astype(jnp.bfloat16)

        # Glue: extract non-overlapping patches, features ordered (C, tp, ph, pw).
        xp = xb.reshape(B, C, Tg, tp, Hg, ph, Wg, pw)
        xp = jnp.transpose(xp, (0, 2, 4, 6, 1, 3, 5, 7))          # (B,Tg,Hg,Wg,C,tp,ph,pw)
        xp = xp.reshape(B * Tg * Hg * Wg, C * tp * ph * pw)        # (M, K)

        # Hot path in Pallas: patch projection matmul + bias (MXU, f32 acc).
        out = patch_proj(xp, self.w_mat, self.b_mat,
                         tm=self.tm, out_dtype=self.out_dtype)     # (M, E)

        # Glue: reshape to (B, T', H'*W', E) == torch einsum('ncts->ntsc').
        return out.reshape(B, Tg, Hg * Wg, self.embed_dim)


# ----------------------------- Reference check ------------------------------

def _reference_conv3d(x, w, b, tp, ph, pw):
    # lax conv with NCDHW / OIDHW, stride == kernel (f32 reference).
    y = lax.conv_general_dilated(
        x, w, window_strides=(tp, ph, pw), padding="VALID",
        dimension_numbers=("NCDHW", "OIDHW", "NCDHW"))
    y = y + b.reshape(1, -1, 1, 1, 1)
    B, E, Tg, Hg, Wg = y.shape
    y = y.reshape(B, E, Tg, Hg * Wg)                 # flatten(3)
    return jnp.transpose(y, (0, 2, 3, 1))            # 'ncts->ntsc'


def _check(mod, x, tol=3e-2):
    out = jax.block_until_ready(jax.jit(lambda v: mod(v))(x))
    ref = _reference_conv3d(x, mod.conv_w, mod.conv_b,
                            mod.t_patch_size, mod.patch_size[0], mod.patch_size[1])
    B = x.shape[0]
    assert out.shape == (B, mod.t_grid_size, mod.grid_h * mod.grid_w,
                         mod.embed_dim), out.shape
    outf = out.astype(jnp.float32)
    err = float(jnp.max(jnp.abs(outf - ref)))
    # bf16 operands + bf16 output vs. f32 reference -> loosened tolerance.
    assert jnp.allclose(outf, ref, rtol=tol, atol=tol), err
    return out


if __name__ == "__main__":
    C, T = 4, 8
    patch_size, t_patch_size, embed_dim = 8, 4, 128

    # ---- Test 1: baseline small config (M=16, single block) ----------------
    mod = PatchEmbedPallas(img_size=16, patch_size=patch_size, in_chans=C,
                           embed_dim=embed_dim, frames=T,
                           t_patch_size=t_patch_size,
                           key=jax.random.PRNGKey(0))
    x = jax.random.normal(jax.random.PRNGKey(0), (2, C, T, 16, 16), jnp.float32)
    _check(mod, x)

    # ---- Test 2: M=18 (not a tile multiple) -> partial tail block ----------
    # Exercises the cdiv grid + masked boundary store path (no explicit pad).
    mod2 = PatchEmbedPallas(img_size=24, patch_size=patch_size, in_chans=C,
                            embed_dim=embed_dim, frames=T,
                            t_patch_size=t_patch_size,
                            key=jax.random.PRNGKey(1))
    x2 = jax.random.normal(jax.random.PRNGKey(2), (1, C, T, 24, 24), jnp.float32)
    _check(mod2, x2)

    # ---- Test 3: M=384 -> 256-aligned tile, 2 grid steps (v7x megacore) ----
    mod3 = PatchEmbedPallas(img_size=16, patch_size=patch_size, in_chans=C,
                            embed_dim=embed_dim, frames=T,
                            t_patch_size=t_patch_size,
                            key=jax.random.PRNGKey(3))
    x3 = jax.random.normal(jax.random.PRNGKey(4), (48, C, T, 16, 16), jnp.float32)
    _check(mod3, x3)

    print("KERNEL_OK")
</pallas_src>

<mosaic_0001>
module attributes {stable_mosaic.version = 11 : i64} {
  func.func @_patch_proj_kernel(%arg0: i32, %arg1: memref<16x1024xbf16, #tpu.memory_space<vmem>>, %arg2: memref<1024x128xbf16, #tpu.memory_space<vmem>>, %arg3: memref<1x128xf32, #tpu.memory_space<vmem>>, %arg4: memref<16x128xbf16, #tpu.memory_space<vmem>>) attributes {dimension_semantics = [#tpu.dimension_semantics<parallel>], iteration_bounds = array<i64: 1>, scalar_prefetch = 0 : i64, scratch_operands = 0 : i64, tpu.core_type = #tpu.core_type<tc>, window_params = [{transform_indices = @transform_0, window_bounds = array<i64: 16, 1024>}, {pipeline_mode = #tpu.pipeline_mode<synchronous>, transform_indices = @transform_1, window_bounds = array<i64: 1024, 128>}, {pipeline_mode = #tpu.pipeline_mode<synchronous>, transform_indices = @transform_2, window_bounds = array<i64: 1, 128>}, {transform_indices = @transform_3, window_bounds = array<i64: 16, 128>}]} {
    %c0 = arith.constant 0 : index
    %c0_0 = arith.constant 0 : index
    %0 = vector.load %arg1[%c0, %c0_0] : memref<16x1024xbf16, #tpu.memory_space<vmem>>, vector<16x1024xbf16>
    %c0_1 = arith.constant 0 : index
    %c0_2 = arith.constant 0 : index
    %1 = vector.load %arg2[%c0_1, %c0_2] : memref<1024x128xbf16, #tpu.memory_space<vmem>>, vector<1024x128xbf16>
    %cst = arith.constant dense<0.000000e+00> : vector<16x128xf32>
    %2 = tpu.matmul %0, %1, %cst {dimension_numbers = #tpu.dot_dimension_numbers<[1], [0], [0], [1], [0, 0, 1, 1], [], []>} : vector<16x1024xbf16>, vector<1024x128xbf16>, vector<16x128xf32> -> vector<16x128xf32>
    %c0_3 = arith.constant 0 : index
    %c0_4 = arith.constant 0 : index
    %3 = vector.load %arg3[%c0_3, %c0_4] : memref<1x128xf32, #tpu.memory_space<vmem>>, vector<1x128xf32>
    %4 = vector.broadcast %3 : vector<1x128xf32> to vector<16x128xf32>
    %5 = arith.addf %2, %4 : vector<16x128xf32>
    %6 = arith.truncf %5 : vector<16x128xf32> to vector<16x128xbf16>
    %c0_5 = arith.constant 0 : index
    %c0_6 = arith.constant 0 : index
    %7 = vector.load %arg4[%c0_5, %c0_6] : memref<16x128xbf16, #tpu.memory_space<vmem>>, vector<16x128xbf16>
    tpu.vector_store %arg4[%c0_5, %c0_6], %6 {strides = array<i32>} : memref<16x128xbf16, #tpu.memory_space<vmem>>, vector<16x128xbf16>,
    return
  }
  func.func @transform_0(%arg0: i32) -> (i32, i32) {
    %c0_i32 = arith.constant 0 : i32
    %c0_i32_0 = arith.constant 0 : i32
    return %arg0, %c0_i32 : i32, i32
  }
  func.func @transform_1(%arg0: i32) -> (i32, i32) {
    %c0_i32 = arith.constant 0 : i32
    %c0_i32_0 = arith.constant 0 : i32
    %c0_i32_1 = arith.constant 0 : i32
    return %c0_i32, %c0_i32_0 : i32, i32
  }
  func.func @transform_2(%arg0: i32) -> (i32, i32) {
    %c0_i32 = arith.constant 0 : i32
    %c0_i32_0 = arith.constant 0 : i32
    %c0_i32_1 = arith.constant 0 : i32
    return %c0_i32, %c0_i32_0 : i32, i32
  }
  func.func @transform_3(%arg0: i32) -> (i32, i32) {
    %c0_i32 = arith.constant 0 : i32
    %c0_i32_0 = arith.constant 0 : i32
    return %arg0, %c0_i32 : i32, i32
  }
}

</mosaic_0001>

<llo_original>
// kernel: _lambda_.1
$region0: #{_lambda_.1}
  #allocation0 [shape = 'u32[]', space=smem, size = 0x4, offset = 0x4, fixed_abs, tag = 'smem constant byte address 0x4 - core index']
  #allocation1 [shape = 'u32[144,128]{1,0:T(1,128)}', space=vmem, size = 0x12000, scoped, tag = 'internal scratch']
  %s0 = inlined_call_operand.vmem [shape: bf16[16,1024], index: 0, kind: input, shape index: {}]
  %s1 = inlined_call_operand.vmem [shape: bf16[1024,128], index: 1, kind: input, shape index: {}]
  %s2 = inlined_call_operand.vmem [shape: f32[1,128], index: 2, kind: input, shape index: {}]
  %s3 = inlined_call_operand.hbm [shape: bf16[16,128], index: 3, kind: output, shape index: {}]
  %s4 = sld [smem:[#allocation0]]
  $region22: #{_lambda_.1} parent=0
    _
  %s6 = ssub.s32 1, %s4
  %s7 = scalar_select 0, %s6, %s4
  $region1: #{_lambda_.1} parent=0
    #allocation2 [shape = 'u8[4096]{0}', space=vmem, size = 0x1000, scoped, tag = 'output window, operand 0, single buffered']
    #allocation3 [shape = 's32[1]{0}', space=sflag, size = 0x4, scoped, tag = 'scoped memory for _lambda_.1']
    %8 = vsyncpa [#allocation3], 0
    // Predicated region
    $region2: #{_lambda_.1} parent=1 // pred_check
      _
    $region3: #{_lambda_.1} parent=1 // pred_check_branch
      %10 = sbr.rel (0) target = $region5
    $region4: #{_lambda_.1} parent=1 // pred_region
      _
    $region5: #{_lambda_.1} parent=1 // pred_fallthru
      _
    // Predicated region
    $region6: #{_lambda_.1} parent=1 // pred_check
      _
    $region7: #{_lambda_.1} parent=1 // pred_check_branch
      %12 = sbr.rel (0) target = $region9
    $region8: #{_lambda_.1} parent=1 // pred_region
      _
    $region9: #{_lambda_.1} parent=1 // pred_fallthru
      _
    // Predicated region
    $region10: #{_lambda_.1} parent=1 // pred_check
      _
    $region11: #{_lambda_.1} parent=1 // pred_check_branch
      %14 = sbr.rel (0) target = $region13
    $region12: #{_lambda_.1} parent=1 // pred_region
      _
    $region13: #{_lambda_.1} parent=1 // pred_fallthru
      _
    %v16 = vld [vmem:[%s0] sm:$0xff]
    %v17 = vld [vmem:[%s0 + $0x8] sm:$0xff]
    %v18 = vld [vmem:[%s0 + $0x10] sm:$0xff]
    %v19 = vld [vmem:[%s0 + $0x18] sm:$0xff]
    %v20 = vld [vmem:[%s0 + $0x20] sm:$0xff]
    %v21 = vld [vmem:[%s0 + $0x28] sm:$0xff]
    %v22 = vld [vmem:[%s0 + $0x30] sm:$0xff]
    %v23 = vld [vmem:[%s0 + $0x38] sm:$0xff]
    %v24 = vld [vmem:[%s1] sm:$0xf]
    %v25 = vld [vmem:[%s1 + $0x4] sm:$0xf]
    %v26 = vld [vmem:[%s1 + $0x8] sm:$0xf]
    %v27 = vld [vmem:[%s1 + $0xc] sm:$0xf]
    %v28 = vld [vmem:[%s1 + $0x10] sm:$0xf]
    %v29 = vld [vmem:[%s1 + $0x14] sm:$0xf]
    %v30 = vld [vmem:[%s1 + $0x18] sm:$0xf]
    %v31 = vld [vmem:[%s1 + $0x1c] sm:$0xf]
    %v32 = vld [vmem:[%s1 + $0x20] sm:$0xf]
    %v33 = vld [vmem:[%s1 + $0x24] sm:$0xf]
    %v34 = vld [vmem:[%s1 + $0x28] sm:$0xf]
    %v35 = vld [vmem:[%s1 + $0x2c] sm:$0xf]
    %v36 = vld [vmem:[%s1 + $0x30] sm:$0xf]
    %v37 = vld [vmem:[%s1 + $0x34] sm:$0xf]
    %v38 = vld [vmem:[%s1 + $0x38] sm:$0xf]
    %v39 = vld [vmem:[%s1 + $0x3c] sm:$0xf]
    %v40 = vld [vmem:[%s1 + $0x40] sm:$0xf]
    %v41 = vld [vmem:[%s1 + $0x44] sm:$0xf]
    %v42 = vld [vmem:[%s1 + $0x48] sm:$0xf]
    %v43 = vld [vmem:[%s1 + $0x4c] sm:$0xf]
    %v44 = vld [vmem:[%s1 + $0x50] sm:$0xf]
    %v45 = vld [vmem:[%s1 + $0x54] sm:$0xf]
    %v46 = vld [vmem:[%s1 + $0x58] sm:$0xf]
    %v47 = vld [vmem:[%s1 + $0x5c] sm:$0xf]
    %v48 = vld [vmem:[%s1 + $0x60] sm:$0xf]
    %v49 = vld [vmem:[%s1 + $0x64] sm:$0xf]
    %v50 = vld [vmem:[%s1 + $0x68] sm:$0xf]
    %v51 = vld [vmem:[%s1 + $0x6c] sm:$0xf]
    %v52 = vld [vmem:[%s1 + $0x70] sm:$0xf]
    %v53 = vld [vmem:[%s1 + $0x74] sm:$0xf]
    %v54 = vld [vmem:[%s1 + $0x78] sm:$0xf]
    %v55 = vld [vmem:[%s1 + $0x7c] sm:$0xf]
    %v56 = vld [vmem:[%s1 + $0x80] sm:$0xf]
    %v57 = vld [vmem:[%s1 + $0x84] sm:$0xf]
    %v58 = vld [vmem:[%s1 + $0x88] sm:$0xf]
    %v59 = vld [vmem:[%s1 + $0x8c] sm:$0xf]
    %v60 = vld [vmem:[%s1 + $0x90] sm:$0xf]
    %v61 = vld [vmem:[%s1 + $0x94] sm:$0xf]
    %v62 = vld [vmem:[%s1 + $0x98] sm:$0xf]
    %v63 = vld [vmem:[%s1 + $0x9c] sm:$0xf]
    %v64 = vld [vmem:[%s1 + $0xa0] sm:$0xf]
    %v65 = vld [vmem:[%s1 + $0xa4] sm:$0xf]
    %v66 = vld [vmem:[%s1 + $0xa8] sm:$0xf]
    %v67 = vld [vmem:[%s1 + $0xac] sm:$0xf]
    %v68 = vld [vmem:[%s1 + $0xb0] sm:$0xf]
    %v69 = vld [vmem:[%s1 + $0xb4] sm:$0xf]
    %v70 = vld [vmem:[%s1 + $0xb8] sm:$0xf]
    %v71 = vld [vmem:[%s1 + $0xbc] sm:$0xf]
    %v72 = vld [vmem:[%s1 + $0xc0] sm:$0xf]
    %v73 = vld [vmem:[%s1 + $0xc4] sm:$0xf]
    %v74 = vld [vmem:[%s1 + $0xc8] sm:$0xf]
    %v75 = vld [vmem:[%s1 + $0xcc] sm:$0xf]
    %v76 = vld [vmem:[%s1 + $0xd0] sm:$0xf]
    %v77 = vld [vmem:[%s1 + $0xd4] sm:$0xf]
    %v78 = vld [vmem:[%s1 + $0xd8] sm:$0xf]
    %v79 = vld [vmem:[%s1 + $0xdc] sm:$0xf]
    %v80 = vld [vmem:[%s1 + $0xe0] sm:$0xf]
    %v81 = vld [vmem:[%s1 + $0xe4] sm:$0xf]
    %v82 = vld [vmem:[%s1 + $0xe8] sm:$0xf]
    %v83 = vld [vmem:[%s1 + $0xec] sm:$0xf]
    %v84 = vld [vmem:[%s1 + $0xf0] sm:$0xf]
    %v85 = vld [vmem:[%s1 + $0xf4] sm:$0xf]
    %v86 = vld [vmem:[%s1 + $0xf8] sm:$0xf]
    %v87 = vld [vmem:[%s1 + $0xfc] sm:$0xf]
    %v88 = vld [vmem:[%s1 + $0x100] sm:$0xf]
    %v89 = vld [vmem:[%s1 + $0x104] sm:$0xf]
    %v90 = vld [vmem:[%s1 + $0x108] sm:$0xf]
    %v91 = vld [vmem:[%s1 + $0x10c] sm:$0xf]
    %v92 = vld [vmem:[%s1 + $0x110] sm:$0xf]
    %v93 = vld [vmem:[%s1 + $0x114] sm:$0xf]
    %v94 = vld [vmem:[%s1 + $0x118] sm:$0xf]
    %v95 = vld [vmem:[%s1 + $0x11c] sm:$0xf]
    %v96 = vld [vmem:[%s1 + $0x120] sm:$0xf]
    %v97 = vld [vmem:[%s1 + $0x124] sm:$0xf]
    %v98 = vld [vmem:[%s1 + $0x128] sm:$0xf]
    %v99 = vld [vmem:[%s1 + $0x12c] sm:$0xf]
    %v100 = vld [vmem:[%s1 + $0x130] sm:$0xf]
    %v101 = vld [vmem:[%s1 + $0x134] sm:$0xf]
    %v102 = vld [vmem:[%s1 + $0x138] sm:$0xf]
    %v103 = vld [vmem:[%s1 + $0x13c] sm:$0xf]
    %v104 = vld [vmem:[%s1 + $0x140] sm:$0xf]
    %v105 = vld [vmem:[%s1 + $0x144] sm:$0xf]
    %v106 = vld [vmem:[%s1 + $0x148] sm:$0xf]
    %v107 = vld [vmem:[%s1 + $0x14c] sm:$0xf]
    %v108 = vld [vmem:[%s1 + $0x150] sm:$0xf]
    %v109 = vld [vmem:[%s1 + $0x154] sm:$0xf]
    %v110 = vld [vmem:[%s1 + $0x158] sm:$0xf]
    %v111 = vld [vmem:[%s1 + $0x15c] sm:$0xf]
    %v112 = vld [vmem:[%s1 + $0x160] sm:$0xf]
    %v113 = vld [vmem:[%s1 + $0x164] sm:$0xf]
    %v114 = vld [vmem:[%s1 + $0x168] sm:$0xf]
    %v115 = vld [vmem:[%s1 + $0x16c] sm:$0xf]
    %v116 = vld [vmem:[%s1 + $0x170] sm:$0xf]
    %v117 = vld [vmem:[%s1 + $0x174] sm:$0xf]
    %v118 = vld [vmem:[%s1 + $0x178] sm:$0xf]
    %v119 = vld [vmem:[%s1 + $0x17c] sm:$0xf]
    %v120 = vld [vmem:[%s1 + $0x180] sm:$0xf]
    %v121 = vld [vmem:[%s1 + $0x184] sm:$0xf]
    %v122 = vld [vmem:[%s1 + $0x188] sm:$0xf]
    %v123 = vld [vmem:[%s1 + $0x18c] sm:$0xf]
    %v124 = vld [vmem:[%s1 + $0x190] sm:$0xf]
    %v125 = vld [vmem:[%s1 + $0x194] sm:$0xf]
    %v126 = vld [vmem:[%s1 + $0x198] sm:$0xf]
    %v127 = vld [vmem:[%s1 + $0x19c] sm:$0xf]
    %v128 = vld [vmem:[%s1 + $0x1a0] sm:$0xf]
    %v129 = vld [vmem:[%s1 + $0x1a4] sm:$0xf]
    %v130 = vld [vmem:[%s1 + $0x1a8] sm:$0xf]
    %v131 = vld [vmem:[%s1 + $0x1ac] sm:$0xf]
    %v132 = vld [vmem:[%s1 + $0x1b0] sm:$0xf]
    %v133 = vld [vmem:[%s1 + $0x1b4] sm:$0xf]
    %v134 = vld [vmem:[%s1 + $0x1b8] sm:$0xf]
    %v135 = vld [vmem:[%s1 + $0x1bc] sm:$0xf]
    %v136 = vld [vmem:[%s1 + $0x1c0] sm:$0xf]
    %v137 = vld [vmem:[%s1 + $0x1c4] sm:$0xf]
    %v138 = vld [vmem:[%s1 + $0x1c8] sm:$0xf]
    %v139 = vld [vmem:[%s1 + $0x1cc] sm:$0xf]
    %v140 = vld [vmem:[%s1 + $0x1d0] sm:$0xf]
    %v141 = vld [vmem:[%s1 + $0x1d4] sm:$0xf]
    %v142 = vld [vmem:[%s1 + $0x1d8] sm:$0xf]
    %v143 = vld [vmem:[%s1 + $0x1dc] sm:$0xf]
    %v144 = vld [vmem:[%s1 + $0x1e0] sm:$0xf]
    %v145 = vld [vmem:[%s1 + $0x1e4] sm:$0xf]
    %v146 = vld [vmem:[%s1 + $0x1e8] sm:$0xf]
    %v147 = vld [vmem:[%s1 + $0x1ec] sm:$0xf]
    %v148 = vld [vmem:[%s1 + $0x1f0] sm:$0xf]
    %v149 = vld [vmem:[%s1 + $0x1f4] sm:$0xf]
    %v150 = vld [vmem:[%s1 + $0x1f8] sm:$0xf]
    %v151 = vld [vmem:[%s1 + $0x1fc] sm:$0xf]
    %v152 = vld [vmem:[%s2] sm:$0x1]
    %v154 = vlaneseq
    %v155 = vshrl.u32 %v154, 7
    %v156 = vsub.s32 0, %v155
    %v157 = vrot.slane %v152, %v156
    %v167 = vunpack.c.l.b16 %v16
    %v168 = vunpack.c.h.b16 %v16
    %v169 = vunpack.c.l.b16 %v17
    %v170 = vunpack.c.h.b16 %v17
    %v171 = vunpack.c.l.b16 %v18
    %v172 = vunpack.c.h.b16 %v18
    %v173 = vunpack.c.l.b16 %v19
    %v174 = vunpack.c.h.b16 %v19
    %v175 = vunpack.c.l.b16 %v20
    %v176 = vunpack.c.h.b16 %v20
    %v177 = vunpack.c.l.b16 %v21
    %v178 = vunpack.c.h.b16 %v21
    %v179 = vunpack.c.l.b16 %v22
    %v180 = vunpack.c.h.b16 %v22
    %v181 = vunpack.c.l.b16 %v23
    %v182 = vunpack.c.h.b16 %v23
    %v183 = vpack.c.b16 %v175, %v167
    %v184 = vpack.c.b16 %v176, %v168
    %v185 = vpack.c.b16 %v177, %v169
    %v186 = vpack.c.b16 %v178, %v170
    %v187 = vpack.c.b16 %v179, %v171
    %v188 = vpack.c.b16 %v180, %v172
    %v189 = vpack.c.b16 %v181, %v173
    %v190 = vpack.c.b16 %v182, %v174
    %v327 = vunpack.c.l.b16 %v24
    %v328 = vunpack.c.l.b16 %v25
    %v329 = vunpack.c.l.b16 %v26
    %v330 = vunpack.c.l.b16 %v27
    %v331 = vunpack.c.l.b16 %v28
    %v332 = vunpack.c.l.b16 %v29
    %v333 = vunpack.c.l.b16 %v30
    %v334 = vunpack.c.l.b16 %v31
    %v335 = vunpack.c.l.b16 %v32
    %v336 = vunpack.c.l.b16 %v33
    %v337 = vunpack.c.l.b16 %v34
    %v338 = vunpack.c.l.b16 %v35
    %v339 = vunpack.c.l.b16 %v36
    %v340 = vunpack.c.l.b16 %v37
    %v341 = vunpack.c.l.b16 %v38
    %v342 = vunpack.c.l.b16 %v39
    %v343 = vunpack.c.l.b16 %v40
    %v344 = vunpack.c.l.b16 %v41
    %v345 = vunpack.c.l.b16 %v42
    %v346 = vunpack.c.l.b16 %v43
    %v347 = vunpack.c.l.b16 %v44
    %v348 = vunpack.c.l.b16 %v45
    %v349 = vunpack.c.l.b16 %v46
    %v350 = vunpack.c.l.b16 %v47
    %v351 = vunpack.c.l.b16 %v48
    %v352 = vunpack.c.l.b16 %v49
    %v353 = vunpack.c.l.b16 %v50
    %v354 = vunpack.c.l.b16 %v51
    %v355 = vunpack.c.l.b16 %v52
    %v356 = vunpack.c.l.b16 %v53
    %v357 = vunpack.c.l.b16 %v54
    %v358 = vunpack.c.l.b16 %v55
    %v359 = vunpack.c.l.b16 %v56
    %v360 = vunpack.c.l.b16 %v57
    %v361 = vunpack.c.l.b16 %v58
    %v362 = vunpack.c.l.b16 %v59
    %v363 = vunpack.c.l.b16 %v60
    %v364 = vunpack.c.l.b16 %v61
    %v365 = vunpack.c.l.b16 %v62
    %v366 = vunpack.c.l.b16 %v63
    %v367 = vunpack.c.l.b16 %v64
    %v368 = vunpack.c.l.b16 %v65
    %v369 = vunpack.c.l.b16 %v66
    %v370 = vunpack.c.l.b16 %v67
    %v371 = vunpack.c.l.b16 %v68
    %v372 = vunpack.c.l.b16 %v69
    %v373 = vunpack.c.l.b16 %v70
    %v374 = vunpack.c.l.b16 %v71
    %v375 = vunpack.c.l.b16 %v72
    %v376 = vunpack.c.l.b16 %v73
    %v377 = vunpack.c.l.b16 %v74
    %v378 = vunpack.c.l.b16 %v75
    %v379 = vunpack.c.l.b16 %v76
    %v380 = vunpack.c.l.b16 %v77
    %v381 = vunpack.c.l.b16 %v78
    %v382 = vunpack.c.l.b16 %v79
    %v383 = vunpack.c.l.b16 %v80
    %v384 = vunpack.c.l.b16 %v81
    %v385 = vunpack.c.l.b16 %v82
    %v386 = vunpack.c.l.b16 %v83
    %v387 = vunpack.c.l.b16 %v84
    %v388 = vunpack.c.l.b16 %v85
    %v389 = vunpack.c.l.b16 %v86
    %v390 = vunpack.c.l.b16 %v87
    %v391 = vunpack.c.l.b16 %v88
    %v392 = vunpack.c.l.b16 %v89
    %v393 = vunpack.c.l.b16 %v90
    %v394 = vunpack.c.l.b16 %v91
    %v395 = vunpack.c.l.b16 %v92
    %v396 = vunpack.c.l.b16 %v93
    %v397 = vunpack.c.l.b16 %v94
    %v398 = vunpack.c.l.b16 %v95
    %v399 = vunpack.c.l.b16 %v96
    %v400 = vunpack.c.l.b16 %v97
    %v401 = vunpack.c.l.b16 %v98
    %v402 = vunpack.c.l.b16 %v99
    %v403 = vunpack.c.l.b16 %v100
    %v404 = vunpack.c.l.b16 %v101
    %v405 = vunpack.c.l.b16 %v102
    %v406 = vunpack.c.l.b16 %v103
    %v407 = vunpack.c.l.b16 %v104
    %v408 = vunpack.c.l.b16 %v105
    %v409 = vunpack.c.l.b16 %v106
    %v410 = vunpack.c.l.b16 %v107
    %v411 = vunpack.c.l.b16 %v108
    %v412 = vunpack.c.l.b16 %v109
    %v413 = vunpack.c.l.b16 %v110
    %v414 = vunpack.c.l.b16 %v111
    %v415 = vunpack.c.l.b16 %v112
    %v416 = vunpack.c.l.b16 %v113
    %v417 = vunpack.c.l.b16 %v114
    %v418 = vunpack.c.l.b16 %v115
    %v419 = vunpack.c.l.b16 %v116
    %v420 = vunpack.c.l.b16 %v117
    %v421 = vunpack.c.l.b16 %v118
    %v422 = vunpack.c.l.b16 %v119
    %v423 = vunpack.c.l.b16 %v120
    %v424 = vunpack.c.l.b16 %v121
    %v425 = vunpack.c.l.b16 %v122
    %v426 = vunpack.c.l.b16 %v123
    %v427 = vunpack.c.l.b16 %v124
    %v428 = vunpack.c.l.b16 %v125
    %v429 = vunpack.c.l.b16 %v126
    %v430 = vunpack.c.l.b16 %v127
    %v431 = vunpack.c.l.b16 %v128
    %v432 = vunpack.c.l.b16 %v129
    %v433 = vunpack.c.l.b16 %v130
    %v434 = vunpack.c.l.b16 %v131
    %v435 = vunpack.c.l.b16 %v132
    %v436 = vunpack.c.l.b16 %v133
    %v437 = vunpack.c.l.b16 %v134
    %v438 = vunpack.c.l.b16 %v135
    %v439 = vunpack.c.l.b16 %v136
    %v440 = vunpack.c.l.b16 %v137
    %v441 = vunpack.c.l.b16 %v138
    %v442 = vunpack.c.l.b16 %v139
    %v443 = vunpack.c.l.b16 %v140
    %v444 = vunpack.c.l.b16 %v141
    %v445 = vunpack.c.l.b16 %v142
    %v446 = vunpack.c.l.b16 %v143
    %v447 = vunpack.c.l.b16 %v144
    %v448 = vunpack.c.l.b16 %v145
    %v449 = vunpack.c.l.b16 %v146
    %v450 = vunpack.c.l.b16 %v147
    %v451 = vunpack.c.l.b16 %v148
    %v452 = vunpack.c.l.b16 %v149
    %v453 = vunpack.c.l.b16 %v150
    %v454 = vunpack.c.l.b16 %v151
    %v455 = vpack.c.b16 %v328, %v327
    %v456 = vpack.c.b16 %v330, %v329
    %v457 = vpack.c.b16 %v332, %v331
    %v458 = vpack.c.b16 %v334, %v333
    %v459 = vpack.c.b16 %v336, %v335
    %v460 = vpack.c.b16 %v338, %v337
    %v461 = vpack.c.b16 %v340, %v339
    %v462 = vpack.c.b16 %v342, %v341
    %v463 = vpack.c.b16 %v344, %v343
    %v464 = vpack.c.b16 %v346, %v345
    %v465 = vpack.c.b16 %v348, %v347
    %v466 = vpack.c.b16 %v350, %v349
    %v467 = vpack.c.b16 %v352, %v351
    %v468 = vpack.c.b16 %v354, %v353
    %v469 = vpack.c.b16 %v356, %v355
    %v470 = vpack.c.b16 %v358, %v357
    %v471 = vpack.c.b16 %v360, %v359
    %v472 = vpack.c.b16 %v362, %v361
    %v473 = vpack.c.b16 %v364, %v363
    %v474 = vpack.c.b16 %v366, %v365
    %v475 = vpack.c.b16 %v368, %v367
    %v476 = vpack.c.b16 %v370, %v369
    %v477 = vpack.c.b16 %v372, %v371
    %v478 = vpack.c.b16 %v374, %v373
    %v479 = vpack.c.b16 %v376, %v375
    %v480 = vpack.c.b16 %v378, %v377
    %v481 = vpack.c.b16 %v380, %v379
    %v482 = vpack.c.b16 %v382, %v381
    %v483 = vpack.c.b16 %v384, %v383
    %v484 = vpack.c.b16 %v386, %v385
    %v485 = vpack.c.b16 %v388, %v387
    %v486 = vpack.c.b16 %v390, %v389
    %v487 = vpack.c.b16 %v392, %v391
    %v488 = vpack.c.b16 %v394, %v393
    %v489 = vpack.c.b16 %v396, %v395
    %v490 = vpack.c.b16 %v398, %v397
    %v491 = vpack.c.b16 %v400, %v399
    %v492 = vpack.c.b16 %v402, %v401
    %v493 = vpack.c.b16 %v404, %v403
    %v494 = vpack.c.b16 %v406, %v405
    %v495 = vpack.c.b16 %v408, %v407
    %v496 = vpack.c.b16 %v410, %v409
    %v497 = vpack.c.b16 %v412, %v411
    %v498 = vpack.c.b16 %v414, %v413
    %v499 = vpack.c.b16 %v416, %v415
    %v500 = vpack.c.b16 %v418, %v417
    %v501 = vpack.c.b16 %v420, %v419
    %v502 = vpack.c.b16 %v422, %v421
    %v503 = vpack.c.b16 %v424, %v423
    %v504 = vpack.c.b16 %v426, %v425
    %v505 = vpack.c.b16 %v428, %v427
    %v506 = vpack.c.b16 %v430, %v429
    %v507 = vpack.c.b16 %v432, %v431
    %v508 = vpack.c.b16 %v434, %v433
    %v509 = vpack.c.b16 %v436, %v435
    %v510 = vpack.c.b16 %v438, %v437
    %v511 = vpack.c.b16 %v440, %v439
    %v512 = vpack.c.b16 %v442, %v441
    %v513 = vpack.c.b16 %v444, %v443
    %v514 = vpack.c.b16 %v446, %v445
    %v515 = vpack.c.b16 %v448, %v447
    %v516 = vpack.c.b16 %v450, %v449
    %v517 = vpack.c.b16 %v452, %v451
    %v518 = vpack.c.b16 %v454, %v453
    %583 = vmatprep.subr.bf16.mxu0 0
    %584 = vmatpush1.bf16.msra.mxu0 %v455
    %585 = vmatprep.subr.bf16.mxu0 0
    %586 = vmatpush1.bf16.msra.mxu0 %v456
    %587 = vmatprep.subr.bf16.mxu0 0
    %588 = vmatpush1.bf16.msra.mxu0 %v457
    %589 = vmatprep.subr.bf16.mxu0 0
    %590 = vmatpush1.bf16.msra.mxu0 %v458
    %591 = vmatprep.subr.bf16.mxu0 0
    %592 = vmatpush1.bf16.msra.mxu0 %v459
    %593 = vmatprep.subr.bf16.mxu0 0
    %594 = vmatpush1.bf16.msra.mxu0 %v460
    %595 = vmatprep.subr.bf16.mxu0 0
    %596 = vmatpush1.bf16.msra.mxu0 %v461
    %597 = vmatprep.subr.bf16.mxu0 0
    %598 = vmatpush1.bf16.msra.mxu0 %v462
    %599 = vmatprep.subr.bf16.mxu0 0
    %600 = vmatpush1.bf16.msra.mxu0 %v463
    %601 = vmatprep.subr.bf16.mxu0 0
    %602 = vmatpush1.bf16.msra.mxu0 %v464
    %603 = vmatprep.subr.bf16.mxu0 0
    %604 = vmatpush1.bf16.msra.mxu0 %v465
    %605 = vmatprep.subr.bf16.mxu0 0
    %606 = vmatpush1.bf16.msra.mxu0 %v466
    %607 = vmatprep.subr.bf16.mxu0 0
    %608 = vmatpush1.bf16.msra.mxu0 %v467
    %609 = vmatprep.subr.bf16.mxu0 0
    %610 = vmatpush1.bf16.msra.mxu0 %v468
    %611 = vmatprep.subr.bf16.mxu0 0
    %612 = vmatpush1.bf16.msra.mxu0 %v469
    %613 = vmatprep.subr.bf16.mxu0 0
    %614 = vmatpush1.bf16.msra.mxu0 %v470
    %615 = vmatprep.mubr.bf16.mxu0 %v184
    %616 = vmatmul.mubr.bf16.gmra.mrb[0].mxu0 %v183
    %v617 = vpop.f32.mrb[0].mxu0
    %v618 = vadd.f32 %v157, %v617
    %v619 = vpop.f32.mrb[0].mxu0
    %v620 = vpop.f32.mrb[0].mxu0
    %v621 = vadd.f32 %v157, %v620
    %v622 = vpop.f32.mrb[0].mxu0
    %623 = vdwg.mxu0
    %624 = vmatprep.subr.bf16.mxu0 0
    %625 = vmatpush1.bf16.msra.mxu0 %v471
    %626 = vmatprep.subr.bf16.mxu0 0
    %627 = vmatpush1.bf16.msra.mxu0 %v472
    %628 = vmatprep.subr.bf16.mxu0 0
    %629 = vmatpush1.bf16.msra.mxu0 %v473
    %630 = vmatprep.subr.bf16.mxu0 0
    %631 = vmatpush1.bf16.msra.mxu0 %v474
    %632 = vmatprep.subr.bf16.mxu0 0
    %633 = vmatpush1.bf16.msra.mxu0 %v475
    %634 = vmatprep.subr.bf16.mxu0 0
    %635 = vmatpush1.bf16.msra.mxu0 %v476
    %636 = vmatprep.subr.bf16.mxu0 0
    %637 = vmatpush1.bf16.msra.mxu0 %v477
    %638 = vmatprep.subr.bf16.mxu0 0
    %639 = vmatpush1.bf16.msra.mxu0 %v478
    %640 = vmatprep.subr.bf16.mxu0 0
    %641 = vmatpush1.bf16.msra.mxu0 %v479
    %642 = vmatprep.subr.bf16.mxu0 0
    %643 = vmatpush1.bf16.msra.mxu0 %v480
    %644 = vmatprep.subr.bf16.mxu0 0
    %645 = vmatpush1.bf16.msra.mxu0 %v481
    %646 = vmatprep.subr.bf16.mxu0 0
    %647 = vmatpush1.bf16.msra.mxu0 %v482
    %648 = vmatprep.subr.bf16.mxu0 0
    %649 = vmatpush1.bf16.msra.mxu0 %v483
    %650 = vmatprep.subr.bf16.mxu0 0
    %651 = vmatpush1.bf16.msra.mxu0 %v484
    %652 = vmatprep.subr.bf16.mxu0 0
    %653 = vmatpush1.bf16.msra.mxu0 %v485
    %654 = vmatprep.subr.bf16.mxu0 0
    %655 = vmatpush1.bf16.msra.mxu0 %v486
    %656 = vmatprep.mubr.bf16.mxu0 %v186
    %657 = vmatmul.mubr.bf16.gmra.mrb[0].mxu0 %v185
    %v658 = vpop.f32.mrb[0].mxu0
    %v659 = vadd.f32 %v618, %v658
    %v660 = vpop.f32.mrb[0].mxu0
    %v661 = vpop.f32.mrb[0].mxu0
    %v662 = vadd.f32 %v621, %v661
    %v663 = vpop.f32.mrb[0].mxu0
    %664 = vdwg.mxu0
    %665 = vmatprep.subr.bf16.mxu0 0
    %666 = vmatpush1.bf16.msra.mxu0 %v487
    %667 = vmatprep.subr.bf16.mxu0 0
    %668 = vmatpush1.bf16.msra.mxu0 %v488
    %669 = vmatprep.subr.bf16.mxu0 0
    %670 = vmatpush1.bf16.msra.mxu0 %v489
    %671 = vmatprep.subr.bf16.mxu0 0
    %672 = vmatpush1.bf16.msra.mxu0 %v490
    %673 = vmatprep.subr.bf16.mxu0 0
    %674 = vmatpush1.bf16.msra.mxu0 %v491
    %675 = vmatprep.subr.bf16.mxu0 0
    %676 = vmatpush1.bf16.msra.mxu0 %v492
    %677 = vmatprep.subr.bf16.mxu0 0
    %678 = vmatpush1.bf16.msra.mxu0 %v493
    %679 = vmatprep.subr.bf16.mxu0 0
    %680 = vmatpush1.bf16.msra.mxu0 %v494
    %681 = vmatprep.subr.bf16.mxu0 0
    %682 = vmatpush1.bf16.msra.mxu0 %v495
    %683 = vmatprep.subr.bf16.mxu0 0
    %684 = vmatpush1.bf16.msra.mxu0 %v496
    %685 = vmatprep.subr.bf16.mxu0 0
    %686 = vmatpush1.bf16.msra.mxu0 %v497
    %687 = vmatprep.subr.bf16.mxu0 0
    %688 = vmatpush1.bf16.msra.mxu0 %v498
    %689 = vmatprep.subr.bf16.mxu0 0
    %690 = vmatpush1.bf16.msra.mxu0 %v499
    %691 = vmatprep.subr.bf16.mxu0 0
    %692 = vmatpush1.bf16.msra.mxu0 %v500
    %693 = vmatprep.subr.bf16.mxu0 0
    %694 = vmatpush1.bf16.msra.mxu0 %v501
    %695 = vmatprep.subr.bf16.mxu0 0
    %696 = vmatpush1.bf16.msra.mxu0 %v502
    %697 = vmatprep.mubr.bf16.mxu0 %v188
    %698 = vmatmul.mubr.bf16.gmra.mrb[0].mxu0 %v187
    %v699 = vpop.f32.mrb[0].mxu0
    %v700 = vadd.f32 %v659, %v699
    %v701 = vpop.f32.mrb[0].mxu0
    %v702 = vpop.f32.mrb[0].mxu0
    %v703 = vadd.f32 %v662, %v702
    %v704 = vpop.f32.mrb[0].mxu0
    %705 = vdwg.mxu0
    %706 = vmatprep.subr.bf16.mxu0 0
    %707 = vmatpush1.bf16.msra.mxu0 %v503
    %708 = vmatprep.subr.bf16.mxu0 0
    %709 = vmatpush1.bf16.msra.mxu0 %v504
    %710 = vmatprep.subr.bf16.mxu0 0
    %711 = vmatpush1.bf16.msra.mxu0 %v505
    %712 = vmatprep.subr.bf16.mxu0 0
    %713 = vmatpush1.bf16.msra.mxu0 %v506
    %714 = vmatprep.subr.bf16.mxu0 0
    %715 = vmatpush1.bf16.msra.mxu0 %v507
    %716 = vmatprep.subr.bf16.mxu0 0
    %717 = vmatpush1.bf16.msra.mxu0 %v508
    %718 = vmatprep.subr.bf16.mxu0 0
    %719 = vmatpush1.bf16.msra.mxu0 %v509
    %720 = vmatprep.subr.bf16.mxu0 0
    %721 = vmatpush1.bf16.msra.mxu0 %v510
    %722 = vmatprep.subr.bf16.mxu0 0
    %723 = vmatpush1.bf16.msra.mxu0 %v511
    %724 = vmatprep.subr.bf16.mxu0 0
    %725 = vmatpush1.bf16.msra.mxu0 %v512
    %726 = vmatprep.subr.bf16.mxu0 0
    %727 = vmatpush1.bf16.msra.mxu0 %v513
    %728 = vmatprep.subr.bf16.mxu0 0
    %729 = vmatpush1.bf16.msra.mxu0 %v514
    %730 = vmatprep.subr.bf16.mxu0 0
    %731 = vmatpush1.bf16.msra.mxu0 %v515
    %732 = vmatprep.subr.bf16.mxu0 0
    %733 = vmatpush1.bf16.msra.mxu0 %v516
    %734 = vmatprep.subr.bf16.mxu0 0
    %735 = vmatpush1.bf16.msra.mxu0 %v517
    %736 = vmatprep.subr.bf16.mxu0 0
    %737 = vmatpush1.bf16.msra.mxu0 %v518
    %738 = vmatprep.mubr.bf16.mxu0 %v190
    %739 = vmatmul.mubr.bf16.gmra.mrb[0].mxu0 %v189
    %v740 = vpop.f32.mrb[0].mxu0
    %v741 = vadd.f32 %v700, %v740
    %v742 = vpop.f32.mrb[0].mxu0
    %v743 = vpop.f32.mrb[0].mxu0
    %v744 = vadd.f32 %v703, %v743
    %v745 = vpop.f32.mrb[0].mxu0
    %746 = vdwg.mxu0
    %v747 = vpack.c.bf16 %v744, %v741
    %v749 = vunpack.c.l.b16 %v747
    %v750 = vunpack.c.h.b16 %v747
    %v751 = vpack.c.b16 %v749, %v749
    %v752 = vpack.c.b16 %v750, %v750
    %755 = vst [vmem:[#allocation2] sm:$0xf] %v751
    %756 = vst [vmem:[#allocation2 + $0x4] sm:$0xf] %v752
    // Predicated region
    $region14: #{_lambda_.1} parent=1 // pred_check
      _
    $region15: #{_lambda_.1} parent=1 // pred_check_branch
      %758 = sbr.rel (0) target = $region17
    $region16: #{_lambda_.1} parent=1 // pred_region
      %s760 = ssub.s32 128, 128
      %761 = vsyncadd [#allocation3], %s760
      %s762 = sshll.u32 [#allocation2], 4
      %s763 = int_to_ptr.vmem [resolvable:$true] %s762
      %768 = dma.vmem_to_hbm [thread:$0]  %s763, 128, %s3, [#allocation3], 64, 64, 4
    $region17: #{_lambda_.1} parent=1 // pred_fallthru
      _
    // Predicated region
    $region18: #{_lambda_.1} parent=1 // pred_check
      _
    $region19: #{_lambda_.1} parent=1 // pred_check_branch
      %770 = sbr.rel (0) target = $region21
    $region20: #{_lambda_.1} parent=1 // pred_region
      %771 = dma.done [#allocation3], 128
    $region21: #{_lambda_.1} parent=1 // pred_fallthru
      _
    %772 = vsyncpa [#allocation3], 1

</llo_original>
